<compile_context>
chip_gen: v7x
topology: tpu7x:2x2x1
jax: 0.10.0
libtpu: 0.0.40
codegen_flags: <defaults>
</compile_context>

<pallas_src>
import functools

import jax
import jax.numpy as jnp
from jax import lax
from jax.experimental import pallas as pl
from jax.experimental.pallas import tpu as pltpu


def _round_up(n, m):
    return ((n + m - 1) // m) * m


def qkv_fused_kernel(x_ref, w_ref, b_ref, o_ref):
    """One fused projection: o = x @ W^T + b, with W = [Wq; Wk; Wv] (3D, d_model)."""
    x = x_ref[...]
    acc = lax.dot_general(
        x, w_ref[...],
        dimension_numbers=(((1,), (1,)), ((), ())),   # contract d_model vs d_model
        preferred_element_type=jnp.float32,
    )
    o_ref[...] = (acc + b_ref[...]).astype(o_ref.dtype)


@functools.partial(jax.jit, static_argnames=("n_heads", "d_head", "tm_max"))
def mha_forward(x, params, n_heads, d_head, tm_max=256):
    """Pallas implementation of MHA.forward (q/k/v projections + head split).

    x: (B, S, d_model) float32
    returns: q, k, v each of shape (B, S, n_heads, d_head)
    """
    B, S, d_model = x.shape
    D = n_heads * d_head
    M = B * S

    # Fuse the three projections: W_cat (3D, d_model), b_cat (1, 3D).
    # No transpose — contraction is done on the d_model axis inside the kernel.
    w_cat = jnp.concatenate([params["wq"], params["wk"], params["wv"]], axis=0)
    b_cat = jnp.concatenate([params["bq"], params["bk"], params["bv"]]).reshape(1, 3 * D)

    # Tile the M = B*S dimension. TM must be a multiple of 8 (f32 sublane).
    tm = min(tm_max, _round_up(M, 8))
    m_pad = _round_up(M, tm)

    x_flat = x.reshape(M, d_model)
    if m_pad != M:
        # Zero-pad the ragged tail; padded rows are sliced off after the call.
        x_flat = jnp.pad(x_flat, ((0, m_pad - M), (0, 0)))

    grid = (m_pad // tm,)

    qkv_flat = pl.pallas_call(
        qkv_fused_kernel,
        out_shape=jax.ShapeDtypeStruct((m_pad, 3 * D), jnp.float32),
        grid_spec=pltpu.PrefetchScalarGridSpec(
            num_scalar_prefetch=0,
            grid=grid,
            in_specs=[
                # Activation tile: double-buffered, streams over the grid.
                pl.BlockSpec((tm, d_model), lambda i: (i, 0)),
                # Concatenated weight: DMA'd once, resident across the grid.
                pl.BlockSpec((3 * D, d_model), lambda i: (0, 0)),
                # Concatenated bias: resident across the grid.
                pl.BlockSpec((1, 3 * D), lambda i: (0, 0)),
            ],
            out_specs=pl.BlockSpec((tm, 3 * D), lambda i: (i, 0)),
        ),
        compiler_params=pltpu.CompilerParams(
            dimension_semantics=("parallel",),
        ),
    )(x_flat, w_cat, b_cat)

    qkv = qkv_flat[:M]  # drop padded rows
    q = qkv[:, 0 * D:1 * D].reshape(B, S, n_heads, d_head)
    k = qkv[:, 1 * D:2 * D].reshape(B, S, n_heads, d_head)
    v = qkv[:, 2 * D:3 * D].reshape(B, S, n_heads, d_head)
    # TODO(synk): reference forward never applies attention or out_proj and has
    # no return statement; we return the q/k/v tensors it materializes.
    return q, k, v


def _ref_forward(x, params, n_heads, d_head):
    B, S, _ = x.shape
    q = x @ params["wq"].T + params["bq"]
    k = x @ params["wk"].T + params["bk"]
    v = x @ params["wv"].T + params["bv"]
    return (q.reshape(B, S, n_heads, d_head),
            k.reshape(B, S, n_heads, d_head),
            v.reshape(B, S, n_heads, d_head))


if __name__ == "__main__":
    # Small shapes consistent with the module.
    B, S = 2, 8
    d_model, n_heads, d_head = 32, 4, 8
    D = n_heads * d_head

    key = jax.random.PRNGKey(0)
    kx, kq, kk, kv, kbq, kbk, kbv = jax.random.split(key, 7)

    x = jax.random.normal(kx, (B, S, d_model), dtype=jnp.float32)

    # Deterministic parameter init (shapes match nn.Linear(d_model, D)).
    scale = 1.0 / jnp.sqrt(d_model)
    params = {
        "wq": jax.random.uniform(kq, (D, d_model), jnp.float32, -scale, scale),
        "wk": jax.random.uniform(kk, (D, d_model), jnp.float32, -scale, scale),
        "wv": jax.random.uniform(kv, (D, d_model), jnp.float32, -scale, scale),
        "bq": jax.random.uniform(kbq, (D,), jnp.float32, -scale, scale),
        "bk": jax.random.uniform(kbk, (D,), jnp.float32, -scale, scale),
        "bv": jax.random.uniform(kbv, (D,), jnp.float32, -scale, scale),
    }

    q, k, v = mha_forward(x, params, n_heads, d_head)
    jax.block_until_ready((q, k, v))

    q_ref, k_ref, v_ref = _ref_forward(x, params, n_heads, d_head)
    assert q.shape == (B, S, n_heads, d_head)
    assert jnp.allclose(q, q_ref, atol=1e-5)
    assert jnp.allclose(k, k_ref, atol=1e-5)
    assert jnp.allclose(v, v_ref, atol=1e-5)

    print("KERNEL_OK")
</pallas_src>

<mosaic_0001>
module attributes {stable_mosaic.version = 11 : i64} {
  func.func @qkv_fused_kernel(%arg0: i32, %arg1: memref<16x32xf32, #tpu.memory_space<vmem>>, %arg2: memref<96x32xf32, #tpu.memory_space<vmem>>, %arg3: memref<1x96xf32, #tpu.memory_space<vmem>>, %arg4: memref<16x96xf32, #tpu.memory_space<vmem>>) attributes {dimension_semantics = [#tpu.dimension_semantics<parallel>], iteration_bounds = array<i64: 1>, scalar_prefetch = 0 : i64, scratch_operands = 0 : i64, tpu.core_type = #tpu.core_type<tc>, window_params = [{transform_indices = @transform_0, window_bounds = array<i64: 16, 32>}, {pipeline_mode = #tpu.pipeline_mode<synchronous>, transform_indices = @transform_1, window_bounds = array<i64: 96, 32>}, {pipeline_mode = #tpu.pipeline_mode<synchronous>, transform_indices = @transform_2, window_bounds = array<i64: 1, 96>}, {transform_indices = @transform_3, window_bounds = array<i64: 16, 96>}]} {
    %c0 = arith.constant 0 : index
    %c0_0 = arith.constant 0 : index
    %0 = vector.load %arg1[%c0, %c0_0] : memref<16x32xf32, #tpu.memory_space<vmem>>, vector<16x32xf32>
    %c0_1 = arith.constant 0 : index
    %c0_2 = arith.constant 0 : index
    %1 = vector.load %arg2[%c0_1, %c0_2] : memref<96x32xf32, #tpu.memory_space<vmem>>, vector<96x32xf32>
    %cst = arith.constant dense<0.000000e+00> : vector<16x96xf32>
    %2 = tpu.matmul %0, %1, %cst {dimension_numbers = #tpu.dot_dimension_numbers<[1], [1], [0], [0], [0, 0, 1, 0], [], []>} : vector<16x32xf32>, vector<96x32xf32>, vector<16x96xf32> -> vector<16x96xf32>
    %c0_3 = arith.constant 0 : index
    %c0_4 = arith.constant 0 : index
    %3 = vector.load %arg3[%c0_3, %c0_4] : memref<1x96xf32, #tpu.memory_space<vmem>>, vector<1x96xf32>
    %4 = vector.broadcast %3 : vector<1x96xf32> to vector<16x96xf32>
    %5 = arith.addf %2, %4 : vector<16x96xf32>
    %c0_5 = arith.constant 0 : index
    %c0_6 = arith.constant 0 : index
    %6 = vector.load %arg4[%c0_5, %c0_6] : memref<16x96xf32, #tpu.memory_space<vmem>>, vector<16x96xf32>
    tpu.vector_store %arg4[%c0_5, %c0_6], %5 {strides = array<i32>} : memref<16x96xf32, #tpu.memory_space<vmem>>, vector<16x96xf32>,
    return
  }
  func.func @transform_0(%arg0: i32) -> (i32, i32) {
    %c0_i32 = arith.constant 0 : i32
    %c0_i32_0 = arith.constant 0 : i32
    return %arg0, %c0_i32 : i32, i32
  }
  func.func @transform_1(%arg0: i32) -> (i32, i32) {
    %c0_i32 = arith.constant 0 : i32
    %c0_i32_0 = arith.constant 0 : i32
    %c0_i32_1 = arith.constant 0 : i32
    return %c0_i32, %c0_i32_0 : i32, i32
  }
  func.func @transform_2(%arg0: i32) -> (i32, i32) {
    %c0_i32 = arith.constant 0 : i32
    %c0_i32_0 = arith.constant 0 : i32
    %c0_i32_1 = arith.constant 0 : i32
    return %c0_i32, %c0_i32_0 : i32, i32
  }
  func.func @transform_3(%arg0: i32) -> (i32, i32) {
    %c0_i32 = arith.constant 0 : i32
    %c0_i32_0 = arith.constant 0 : i32
    return %arg0, %c0_i32 : i32, i32
  }
}

</mosaic_0001>

<llo_original>
// kernel: mha_forward.1
$region0: #{mha_forward.1}
  #allocation0 [shape = 'u32[]', space=smem, size = 0x4, offset = 0x4, fixed_abs, tag = 'smem constant byte address 0x4 - core index']
  #allocation1 [shape = 'u32[144,128]{1,0:T(1,128)}', space=vmem, size = 0x12000, scoped, tag = 'internal scratch']
  %s0 = inlined_call_operand.vmem [shape: f32[16,32], index: 0, kind: input, shape index: {}]
  %s1 = inlined_call_operand.vmem [shape: f32[96,32], index: 1, kind: input, shape index: {}]
  %s2 = inlined_call_operand.vmem [shape: f32[1,96], index: 2, kind: input, shape index: {}]
  %s3 = inlined_call_operand.vmem [shape: f32[16,96], index: 3, kind: output, shape index: {}]
  %s4 = sld [smem:[#allocation0]]
  $region22: #{mha_forward.1} parent=0
    _
  %s6 = ssub.s32 1, %s4
  %s7 = scalar_select 0, %s6, %s4
  // Predicated region
  $region2: #{mha_forward.1} parent=0 // pred_check
    _
  $region3: #{mha_forward.1} parent=0 // pred_check_branch
    %9 = sbr.rel (0) target = $region5
  $region4: #{mha_forward.1} parent=0 // pred_region
    _
  $region5: #{mha_forward.1} parent=0 // pred_fallthru
    _
  // Predicated region
  $region6: #{mha_forward.1} parent=0 // pred_check
    _
  $region7: #{mha_forward.1} parent=0 // pred_check_branch
    %11 = sbr.rel (0) target = $region9
  $region8: #{mha_forward.1} parent=0 // pred_region
    _
  $region9: #{mha_forward.1} parent=0 // pred_fallthru
    _
  // Predicated region
  $region10: #{mha_forward.1} parent=0 // pred_check
    _
  $region11: #{mha_forward.1} parent=0 // pred_check_branch
    %13 = sbr.rel (0) target = $region13
  $region12: #{mha_forward.1} parent=0 // pred_region
    _
  $region13: #{mha_forward.1} parent=0 // pred_fallthru
    _
  %v14 = vld [vmem:[%s0] sm:$0xff]
  %v15 = vld [vmem:[%s0 + $0x8] sm:$0xff]
  %v16 = vld [vmem:[%s1] sm:$0xff]
  %v17 = vld [vmem:[%s1 + $0x8] sm:$0xff]
  %v18 = vld [vmem:[%s1 + $0x10] sm:$0xff]
  %v19 = vld [vmem:[%s1 + $0x18] sm:$0xff]
  %v20 = vld [vmem:[%s1 + $0x20] sm:$0xff]
  %v21 = vld [vmem:[%s1 + $0x28] sm:$0xff]
  %v22 = vld [vmem:[%s1 + $0x30] sm:$0xff]
  %v23 = vld [vmem:[%s1 + $0x38] sm:$0xff]
  %v24 = vld [vmem:[%s1 + $0x40] sm:$0xff]
  %v25 = vld [vmem:[%s1 + $0x48] sm:$0xff]
  %v26 = vld [vmem:[%s1 + $0x50] sm:$0xff]
  %v27 = vld [vmem:[%s1 + $0x58] sm:$0xff]
  %v28 = vld [vmem:[%s2] sm:$0x1]
  %v30 = vlaneseq
  %v31 = vshrl.u32 %v30, 7
  %v32 = vsub.s32 0, %v31
  %v33 = vrot.slane %v28, %v32
  %vm35 = vcmask 261120
  %v37 = vsel %vm35, %v14, 0
  %v40 = vsel %vm35, %v15, 0
  %v43 = vsel %vm35, %v16, 0
  %v46 = vsel %vm35, %v17, 0
  %v49 = vsel %vm35, %v18, 0
  %v52 = vsel %vm35, %v19, 0
  %v55 = vsel %vm35, %v20, 0
  %v58 = vsel %vm35, %v21, 0
  %v61 = vsel %vm35, %v22, 0
  %v64 = vsel %vm35, %v23, 0
  %v67 = vsel %vm35, %v24, 0
  %v70 = vsel %vm35, %v25, 0
  %v73 = vsel %vm35, %v26, 0
  %v76 = vsel %vm35, %v27, 0
  %78 = vmatprep.subr.mxu0 0.0
  %79 = vmatpush1.xpose.msra.mxu0 %v43
  %80 = vmatprep.subr.mxu0 0.0
  %81 = vmatpush1.xpose.msra.mxu0 %v46
  %82 = vmatprep.subr.mxu0 0.0
  %83 = vmatpush1.xpose.msra.mxu0 %v49
  %84 = vmatprep.subr.mxu0 0.0
  %85 = vmatpush1.xpose.msra.mxu0 %v52
  %86 = vmatprep.subr.mxu0 0.0
  %87 = vmatpush1.xpose.msra.mxu0 %v55
  %88 = vmatprep.subr.mxu0 0.0
  %89 = vmatpush1.xpose.msra.mxu0 %v58
  %90 = vmatprep.subr.mxu0 0.0
  %91 = vmatpush1.xpose.msra.mxu0 %v61
  %92 = vmatprep.subr.mxu0 0.0
  %93 = vmatpush1.xpose.msra.mxu0 %v64
  %94 = vmatprep.subr.mxu0 0.0
  %95 = vmatpush1.xpose.msra.mxu0 %v67
  %96 = vmatprep.subr.mxu0 0.0
  %97 = vmatpush1.xpose.msra.mxu0 %v70
  %98 = vmatprep.subr.mxu0 0.0
  %99 = vmatpush1.xpose.msra.mxu0 %v73
  %100 = vmatprep.subr.mxu0 0.0
  %101 = vmatpush1.xpose.msra.mxu0 %v76
  %102 = vmatprep.subr.mxu0 0.0
  %103 = vmatpush1.xpose.msra.mxu0 0.0
  %104 = vmatprep.subr.mxu0 0.0
  %105 = vmatpush1.xpose.msra.mxu0 0.0
  %106 = vmatprep.subr.mxu0 0.0
  %107 = vmatpush1.xpose.msra.mxu0 0.0
  %108 = vmatprep.subr.mxu0 0.0
  %109 = vmatpush1.xpose.msra.mxu0 0.0
  %110 = vmatprep.subr.mxu0 0.0
  %111 = vmatpush1.xpose.msra.mxu0 0.0
  %112 = vmatprep.subr.mxu0 0.0
  %113 = vmatpush1.xpose.msra.mxu0 0.0
  %114 = vmatprep.subr.mxu0 0.0
  %115 = vmatpush1.xpose.msra.mxu0 0.0
  %116 = vmatprep.subr.mxu0 0.0
  %117 = vmatpush1.xpose.msra.mxu0 0.0
  %118 = vmatprep.subr.mxu0 0.0
  %119 = vmatpush1.xpose.msra.mxu0 0.0
  %120 = vmatprep.subr.mxu0 0.0
  %121 = vmatpush1.xpose.msra.mxu0 0.0
  %122 = vmatprep.subr.mxu0 0.0
  %123 = vmatpush1.xpose.msra.mxu0 0.0
  %124 = vmatprep.subr.mxu0 0.0
  %125 = vmatpush1.xpose.msra.mxu0 0.0
  %126 = vmatprep.subr.mxu0 0.0
  %127 = vmatpush1.xpose.msra.mxu0 0.0
  %128 = vmatprep.subr.mxu0 0.0
  %129 = vmatpush1.xpose.msra.mxu0 0.0
  %130 = vmatprep.subr.mxu0 0.0
  %131 = vmatpush1.xpose.msra.mxu0 0.0
  %132 = vmatprep.subr.mxu0 0.0
  %133 = vmatpush1.xpose.msra.mxu0 0.0
  %134 = vmatprep.subr.mxu0 0.0
  %135 = vmatpush1.xpose.msra.mxu0 0.0
  %136 = vmatprep.subr.mxu0 0.0
  %137 = vmatpush1.xpose.msra.mxu0 0.0
  %138 = vmatprep.subr.mxu0 0.0
  %139 = vmatpush1.xpose.msra.mxu0 0.0
  %140 = vmatprep.subr.mxu0 0.0
  %141 = vmatpush1.xpose.msra.mxu0 0.0
  %142 = vmatprep.mubr.f32.mxu0 0.0
  %143 = vmatmul.mubr.f32.gmra.mrb[0].mxu0 %v37
  %v144 = vpop.f32.mrb[0].mxu0
  %v145 = vadd.f32 %v33, %v144
  %v146 = vpop.f32.mrb[0].mxu0
  %147 = vmatprep.mubr.f32.mxu0 0.0
  %148 = vmatmul.mubr.f32.gmra.mrb[0].mxu0 %v40
  %v149 = vpop.f32.mrb[0].mxu0
  %v150 = vadd.f32 %v33, %v149
  %v151 = vpop.f32.mrb[0].mxu0
  %152 = vdwg.mxu0
  %vm153 = vcmask 785408
  %154 = vst.msk [vmem:[%s3] sm:$0xff] %vm153, %v145
  %155 = vst.msk [vmem:[%s3 + $0x8] sm:$0xff] %vm153, %v150
  // Predicated region
  $region14: #{mha_forward.1} parent=0 // pred_check
    _
  $region15: #{mha_forward.1} parent=0 // pred_check_branch
    %157 = sbr.rel (0) target = $region17
  $region16: #{mha_forward.1} parent=0 // pred_region
    _
  $region17: #{mha_forward.1} parent=0 // pred_fallthru
    _
  // Predicated region
  $region18: #{mha_forward.1} parent=0 // pred_check
    _
  $region19: #{mha_forward.1} parent=0 // pred_check_branch
    %159 = sbr.rel (0) target = $region21
  $region20: #{mha_forward.1} parent=0 // pred_region
    _
  $region21: #{mha_forward.1} parent=0 // pred_fallthru
    _

</llo_original>
